<compile_context>
chip_gen: v7x
topology: tpu7x:2x2x1
jax: 0.10.0
libtpu: 0.0.40
codegen_flags: <defaults>
</compile_context>

<pallas_src>
import jax
import jax.numpy as jnp
from jax.experimental import pallas as pl
from jax.experimental.pallas import tpu as pltpu

_MAX_SLICES = 8  # 4-8 outstanding DMAs is enough to saturate HBM on v5e/v6e/v7x.


def _make_hbm_copy_kernel(slices):
    """Build a kernel that DMAs `slices` (static (start, size) row ranges)
    directly from the input HBM ref to the output HBM ref."""

    def kernel(x_hbm, o_hbm, sems):
        copies = []
        for i, (start, size) in enumerate(slices):
            cp = pltpu.make_async_copy(
                x_hbm.at[pl.ds(start, size)],
                o_hbm.at[pl.ds(start, size)],
                sems.at[i],
            )
            cp.start()
            copies.append(cp)
        # Wait on all outstanding DMAs before the kernel returns.
        for cp in copies:
            cp.wait()

    return kernel


def _pallas_hbm_copy(x):
    """Materialize one physical copy of `x` via direct HBM->HBM DMAs."""
    x2 = x if x.ndim >= 1 else x.reshape(1)
    rows = x2.shape[0]

    # Split the leading dim into up to _MAX_SLICES contiguous, non-empty slices.
    n_slices = max(1, min(_MAX_SLICES, rows))
    base, rem = divmod(rows, n_slices)
    sizes = [base + (1 if i < rem else 0) for i in range(n_slices)]
    starts = []
    acc = 0
    for s in sizes:
        starts.append(acc)
        acc += s
    slices = [(st, sz) for st, sz in zip(starts, sizes) if sz > 0]

    nbytes = x2.size * x2.dtype.itemsize

    out2 = pl.pallas_call(
        _make_hbm_copy_kernel(slices),
        out_shape=jax.ShapeDtypeStruct(x2.shape, x2.dtype),
        in_specs=[pl.BlockSpec(memory_space=pl.ANY)],   # stay in HBM, no auto-DMA
        out_specs=pl.BlockSpec(memory_space=pl.ANY),
        scratch_shapes=[pltpu.SemaphoreType.DMA((len(slices),))],
        cost_estimate=pl.CostEstimate(
            flops=0, transcendentals=0, bytes_accessed=2 * nbytes),
        compiler_params=pltpu.CompilerParams(has_side_effects=True),
    )(x2)

    return out2.reshape(x.shape)


def lb_baseline_forward(x, prev_h=None):
    """Equivalent of LB_baseline.forward: returns (x, x).

    The PyTorch reference returns two references to the same tensor, so the
    fastest correct implementation is pure aliasing: no kernel, no HBM traffic.
    `prev_h` is accepted and ignored, matching the PyTorch signature.
    """
    return x, x


def lb_baseline_forward_materialized(x, prev_h=None):
    """Same semantics, but the second output is a physically distinct buffer
    produced by the Pallas HBM->HBM DMA copy kernel (for harnesses that demand
    independently-owned outputs)."""
    return x, _pallas_hbm_copy(x)


if __name__ == "__main__":
    key = jax.random.PRNGKey(0)
    # Small PyG-like node feature matrix: 64 nodes, 32 features.
    x = jax.random.normal(key, (64, 32), dtype=jnp.float32)

    # Zero-copy path (exact reference semantics).
    out0, out1 = lb_baseline_forward(x, prev_h=None)
    jax.block_until_ready((out0, out1))
    assert out0.shape == x.shape and out1.shape == x.shape
    assert jnp.array_equal(out0, x) and jnp.array_equal(out1, x)

    # Materialized path: exercises the Pallas HBM->HBM DMA kernel once.
    m0, m1 = lb_baseline_forward_materialized(x, prev_h=None)
    jax.block_until_ready((m0, m1))
    assert m0.shape == x.shape and m1.shape == x.shape
    assert jnp.array_equal(m0, x) and jnp.array_equal(m1, x)

    print("KERNEL_OK")
</pallas_src>

<mosaic_0001>
module attributes {stable_mosaic.version = 11 : i64} {
  func.func @kernel(%arg0: memref<64x32xf32, #tpu.memory_space<any>>, %arg1: memref<64x32xf32, #tpu.memory_space<any>>, %arg2: memref<8x!tpu.dma_semaphore, #tpu.memory_space<semaphore_mem>>) attributes {dimension_semantics = [], scalar_prefetch = 0 : i64, scratch_operands = 1 : i64, tpu.core_type = #tpu.core_type<tc>} {
    %c0_i32 = arith.constant 0 : i32
    %c0_i32_0 = arith.constant 0 : i32
    %c0_i32_1 = arith.constant 0 : i32
    %0 = tpu.memref_slice %arg0[%c0_i32_0, %c0_i32_1] : memref<64x32xf32, #tpu.memory_space<any>> -> memref<8x32xf32, #tpu.memory_space<any>>
    %c0_i32_2 = arith.constant 0 : i32
    %c0_i32_3 = arith.constant 0 : i32
    %1 = tpu.memref_slice %arg1[%c0_i32_2, %c0_i32_3] : memref<64x32xf32, #tpu.memory_space<any>> -> memref<8x32xf32, #tpu.memory_space<any>>
    %2 = tpu.memref_slice %arg2[%c0_i32] : memref<8x!tpu.dma_semaphore, #tpu.memory_space<semaphore_mem>> -> memref<1x!tpu.dma_semaphore, #tpu.memory_space<semaphore_mem>>
    %3 = tpu.memref_squeeze %2 : memref<1x!tpu.dma_semaphore, #tpu.memory_space<semaphore_mem>> -> memref<!tpu.dma_semaphore, #tpu.memory_space<semaphore_mem>>
    tpu.enqueue_dma source(%0 : memref<8x32xf32, #tpu.memory_space<any>>) target(%1 : memref<8x32xf32, #tpu.memory_space<any>>) target_semaphore(%3 : memref<!tpu.dma_semaphore, #tpu.memory_space<semaphore_mem>>)
    %c1_i32 = arith.constant 1 : i32
    %c8_i32 = arith.constant 8 : i32
    %c0_i32_4 = arith.constant 0 : i32
    %4 = tpu.memref_slice %arg0[%c8_i32, %c0_i32_4] : memref<64x32xf32, #tpu.memory_space<any>> -> memref<8x32xf32, #tpu.memory_space<any>>
    %c8_i32_5 = arith.constant 8 : i32
    %c0_i32_6 = arith.constant 0 : i32
    %5 = tpu.memref_slice %arg1[%c8_i32_5, %c0_i32_6] : memref<64x32xf32, #tpu.memory_space<any>> -> memref<8x32xf32, #tpu.memory_space<any>>
    %6 = tpu.memref_slice %arg2[%c1_i32] : memref<8x!tpu.dma_semaphore, #tpu.memory_space<semaphore_mem>> -> memref<1x!tpu.dma_semaphore, #tpu.memory_space<semaphore_mem>>
    %7 = tpu.memref_squeeze %6 : memref<1x!tpu.dma_semaphore, #tpu.memory_space<semaphore_mem>> -> memref<!tpu.dma_semaphore, #tpu.memory_space<semaphore_mem>>
    tpu.enqueue_dma source(%4 : memref<8x32xf32, #tpu.memory_space<any>>) target(%5 : memref<8x32xf32, #tpu.memory_space<any>>) target_semaphore(%7 : memref<!tpu.dma_semaphore, #tpu.memory_space<semaphore_mem>>)
    %c2_i32 = arith.constant 2 : i32
    %c16_i32 = arith.constant 16 : i32
    %c0_i32_7 = arith.constant 0 : i32
    %8 = tpu.memref_slice %arg0[%c16_i32, %c0_i32_7] : memref<64x32xf32, #tpu.memory_space<any>> -> memref<8x32xf32, #tpu.memory_space<any>>
    %c16_i32_8 = arith.constant 16 : i32
    %c0_i32_9 = arith.constant 0 : i32
    %9 = tpu.memref_slice %arg1[%c16_i32_8, %c0_i32_9] : memref<64x32xf32, #tpu.memory_space<any>> -> memref<8x32xf32, #tpu.memory_space<any>>
    %10 = tpu.memref_slice %arg2[%c2_i32] : memref<8x!tpu.dma_semaphore, #tpu.memory_space<semaphore_mem>> -> memref<1x!tpu.dma_semaphore, #tpu.memory_space<semaphore_mem>>
    %11 = tpu.memref_squeeze %10 : memref<1x!tpu.dma_semaphore, #tpu.memory_space<semaphore_mem>> -> memref<!tpu.dma_semaphore, #tpu.memory_space<semaphore_mem>>
    tpu.enqueue_dma source(%8 : memref<8x32xf32, #tpu.memory_space<any>>) target(%9 : memref<8x32xf32, #tpu.memory_space<any>>) target_semaphore(%11 : memref<!tpu.dma_semaphore, #tpu.memory_space<semaphore_mem>>)
    %c3_i32 = arith.constant 3 : i32
    %c24_i32 = arith.constant 24 : i32
    %c0_i32_10 = arith.constant 0 : i32
    %12 = tpu.memref_slice %arg0[%c24_i32, %c0_i32_10] : memref<64x32xf32, #tpu.memory_space<any>> -> memref<8x32xf32, #tpu.memory_space<any>>
    %c24_i32_11 = arith.constant 24 : i32
    %c0_i32_12 = arith.constant 0 : i32
    %13 = tpu.memref_slice %arg1[%c24_i32_11, %c0_i32_12] : memref<64x32xf32, #tpu.memory_space<any>> -> memref<8x32xf32, #tpu.memory_space<any>>
    %14 = tpu.memref_slice %arg2[%c3_i32] : memref<8x!tpu.dma_semaphore, #tpu.memory_space<semaphore_mem>> -> memref<1x!tpu.dma_semaphore, #tpu.memory_space<semaphore_mem>>
    %15 = tpu.memref_squeeze %14 : memref<1x!tpu.dma_semaphore, #tpu.memory_space<semaphore_mem>> -> memref<!tpu.dma_semaphore, #tpu.memory_space<semaphore_mem>>
    tpu.enqueue_dma source(%12 : memref<8x32xf32, #tpu.memory_space<any>>) target(%13 : memref<8x32xf32, #tpu.memory_space<any>>) target_semaphore(%15 : memref<!tpu.dma_semaphore, #tpu.memory_space<semaphore_mem>>)
    %c4_i32 = arith.constant 4 : i32
    %c32_i32 = arith.constant 32 : i32
    %c0_i32_13 = arith.constant 0 : i32
    %16 = tpu.memref_slice %arg0[%c32_i32, %c0_i32_13] : memref<64x32xf32, #tpu.memory_space<any>> -> memref<8x32xf32, #tpu.memory_space<any>>
    %c32_i32_14 = arith.constant 32 : i32
    %c0_i32_15 = arith.constant 0 : i32
    %17 = tpu.memref_slice %arg1[%c32_i32_14, %c0_i32_15] : memref<64x32xf32, #tpu.memory_space<any>> -> memref<8x32xf32, #tpu.memory_space<any>>
    %18 = tpu.memref_slice %arg2[%c4_i32] : memref<8x!tpu.dma_semaphore, #tpu.memory_space<semaphore_mem>> -> memref<1x!tpu.dma_semaphore, #tpu.memory_space<semaphore_mem>>
    %19 = tpu.memref_squeeze %18 : memref<1x!tpu.dma_semaphore, #tpu.memory_space<semaphore_mem>> -> memref<!tpu.dma_semaphore, #tpu.memory_space<semaphore_mem>>
    tpu.enqueue_dma source(%16 : memref<8x32xf32, #tpu.memory_space<any>>) target(%17 : memref<8x32xf32, #tpu.memory_space<any>>) target_semaphore(%19 : memref<!tpu.dma_semaphore, #tpu.memory_space<semaphore_mem>>)
    %c5_i32 = arith.constant 5 : i32
    %c40_i32 = arith.constant 40 : i32
    %c0_i32_16 = arith.constant 0 : i32
    %20 = tpu.memref_slice %arg0[%c40_i32, %c0_i32_16] : memref<64x32xf32, #tpu.memory_space<any>> -> memref<8x32xf32, #tpu.memory_space<any>>
    %c40_i32_17 = arith.constant 40 : i32
    %c0_i32_18 = arith.constant 0 : i32
    %21 = tpu.memref_slice %arg1[%c40_i32_17, %c0_i32_18] : memref<64x32xf32, #tpu.memory_space<any>> -> memref<8x32xf32, #tpu.memory_space<any>>
    %22 = tpu.memref_slice %arg2[%c5_i32] : memref<8x!tpu.dma_semaphore, #tpu.memory_space<semaphore_mem>> -> memref<1x!tpu.dma_semaphore, #tpu.memory_space<semaphore_mem>>
    %23 = tpu.memref_squeeze %22 : memref<1x!tpu.dma_semaphore, #tpu.memory_space<semaphore_mem>> -> memref<!tpu.dma_semaphore, #tpu.memory_space<semaphore_mem>>
    tpu.enqueue_dma source(%20 : memref<8x32xf32, #tpu.memory_space<any>>) target(%21 : memref<8x32xf32, #tpu.memory_space<any>>) target_semaphore(%23 : memref<!tpu.dma_semaphore, #tpu.memory_space<semaphore_mem>>)
    %c6_i32 = arith.constant 6 : i32
    %c48_i32 = arith.constant 48 : i32
    %c0_i32_19 = arith.constant 0 : i32
    %24 = tpu.memref_slice %arg0[%c48_i32, %c0_i32_19] : memref<64x32xf32, #tpu.memory_space<any>> -> memref<8x32xf32, #tpu.memory_space<any>>
    %c48_i32_20 = arith.constant 48 : i32
    %c0_i32_21 = arith.constant 0 : i32
    %25 = tpu.memref_slice %arg1[%c48_i32_20, %c0_i32_21] : memref<64x32xf32, #tpu.memory_space<any>> -> memref<8x32xf32, #tpu.memory_space<any>>
    %26 = tpu.memref_slice %arg2[%c6_i32] : memref<8x!tpu.dma_semaphore, #tpu.memory_space<semaphore_mem>> -> memref<1x!tpu.dma_semaphore, #tpu.memory_space<semaphore_mem>>
    %27 = tpu.memref_squeeze %26 : memref<1x!tpu.dma_semaphore, #tpu.memory_space<semaphore_mem>> -> memref<!tpu.dma_semaphore, #tpu.memory_space<semaphore_mem>>
    tpu.enqueue_dma source(%24 : memref<8x32xf32, #tpu.memory_space<any>>) target(%25 : memref<8x32xf32, #tpu.memory_space<any>>) target_semaphore(%27 : memref<!tpu.dma_semaphore, #tpu.memory_space<semaphore_mem>>)
    %c7_i32 = arith.constant 7 : i32
    %c56_i32 = arith.constant 56 : i32
    %c0_i32_22 = arith.constant 0 : i32
    %28 = tpu.memref_slice %arg0[%c56_i32, %c0_i32_22] : memref<64x32xf32, #tpu.memory_space<any>> -> memref<8x32xf32, #tpu.memory_space<any>>
    %c56_i32_23 = arith.constant 56 : i32
    %c0_i32_24 = arith.constant 0 : i32
    %29 = tpu.memref_slice %arg1[%c56_i32_23, %c0_i32_24] : memref<64x32xf32, #tpu.memory_space<any>> -> memref<8x32xf32, #tpu.memory_space<any>>
    %30 = tpu.memref_slice %arg2[%c7_i32] : memref<8x!tpu.dma_semaphore, #tpu.memory_space<semaphore_mem>> -> memref<1x!tpu.dma_semaphore, #tpu.memory_space<semaphore_mem>>
    %31 = tpu.memref_squeeze %30 : memref<1x!tpu.dma_semaphore, #tpu.memory_space<semaphore_mem>> -> memref<!tpu.dma_semaphore, #tpu.memory_space<semaphore_mem>>
    tpu.enqueue_dma source(%28 : memref<8x32xf32, #tpu.memory_space<any>>) target(%29 : memref<8x32xf32, #tpu.memory_space<any>>) target_semaphore(%31 : memref<!tpu.dma_semaphore, #tpu.memory_space<semaphore_mem>>)
    %c0_i32_25 = arith.constant 0 : i32
    %c0_i32_26 = arith.constant 0 : i32
    %c0_i32_27 = arith.constant 0 : i32
    %32 = tpu.memref_slice %arg0[%c0_i32_26, %c0_i32_27] : memref<64x32xf32, #tpu.memory_space<any>> -> memref<8x32xf32, #tpu.memory_space<any>>
    %c0_i32_28 = arith.constant 0 : i32
    %c0_i32_29 = arith.constant 0 : i32
    %33 = tpu.memref_slice %arg1[%c0_i32_28, %c0_i32_29] : memref<64x32xf32, #tpu.memory_space<any>> -> memref<8x32xf32, #tpu.memory_space<any>>
    %34 = tpu.memref_slice %arg2[%c0_i32_25] : memref<8x!tpu.dma_semaphore, #tpu.memory_space<semaphore_mem>> -> memref<1x!tpu.dma_semaphore, #tpu.memory_space<semaphore_mem>>
    %35 = tpu.memref_squeeze %34 : memref<1x!tpu.dma_semaphore, #tpu.memory_space<semaphore_mem>> -> memref<!tpu.dma_semaphore, #tpu.memory_space<semaphore_mem>>
    tpu.wait_dma2 semaphore(%35 : memref<!tpu.dma_semaphore, #tpu.memory_space<semaphore_mem>>) src(%32 : memref<8x32xf32, #tpu.memory_space<any>>) dst(%33 : memref<8x32xf32, #tpu.memory_space<any>>)
    %c1_i32_30 = arith.constant 1 : i32
    %c8_i32_31 = arith.constant 8 : i32
    %c0_i32_32 = arith.constant 0 : i32
    %36 = tpu.memref_slice %arg0[%c8_i32_31, %c0_i32_32] : memref<64x32xf32, #tpu.memory_space<any>> -> memref<8x32xf32, #tpu.memory_space<any>>
    %c8_i32_33 = arith.constant 8 : i32
    %c0_i32_34 = arith.constant 0 : i32
    %37 = tpu.memref_slice %arg1[%c8_i32_33, %c0_i32_34] : memref<64x32xf32, #tpu.memory_space<any>> -> memref<8x32xf32, #tpu.memory_space<any>>
    %38 = tpu.memref_slice %arg2[%c1_i32_30] : memref<8x!tpu.dma_semaphore, #tpu.memory_space<semaphore_mem>> -> memref<1x!tpu.dma_semaphore, #tpu.memory_space<semaphore_mem>>
    %39 = tpu.memref_squeeze %38 : memref<1x!tpu.dma_semaphore, #tpu.memory_space<semaphore_mem>> -> memref<!tpu.dma_semaphore, #tpu.memory_space<semaphore_mem>>
    tpu.wait_dma2 semaphore(%39 : memref<!tpu.dma_semaphore, #tpu.memory_space<semaphore_mem>>) src(%36 : memref<8x32xf32, #tpu.memory_space<any>>) dst(%37 : memref<8x32xf32, #tpu.memory_space<any>>)
    %c2_i32_35 = arith.constant 2 : i32
    %c16_i32_36 = arith.constant 16 : i32
    %c0_i32_37 = arith.constant 0 : i32
    %40 = tpu.memref_slice %arg0[%c16_i32_36, %c0_i32_37] : memref<64x32xf32, #tpu.memory_space<any>> -> memref<8x32xf32, #tpu.memory_space<any>>
    %c16_i32_38 = arith.constant 16 : i32
    %c0_i32_39 = arith.constant 0 : i32
    %41 = tpu.memref_slice %arg1[%c16_i32_38, %c0_i32_39] : memref<64x32xf32, #tpu.memory_space<any>> -> memref<8x32xf32, #tpu.memory_space<any>>
    %42 = tpu.memref_slice %arg2[%c2_i32_35] : memref<8x!tpu.dma_semaphore, #tpu.memory_space<semaphore_mem>> -> memref<1x!tpu.dma_semaphore, #tpu.memory_space<semaphore_mem>>
    %43 = tpu.memref_squeeze %42 : memref<1x!tpu.dma_semaphore, #tpu.memory_space<semaphore_mem>> -> memref<!tpu.dma_semaphore, #tpu.memory_space<semaphore_mem>>
    tpu.wait_dma2 semaphore(%43 : memref<!tpu.dma_semaphore, #tpu.memory_space<semaphore_mem>>) src(%40 : memref<8x32xf32, #tpu.memory_space<any>>) dst(%41 : memref<8x32xf32, #tpu.memory_space<any>>)
    %c3_i32_40 = arith.constant 3 : i32
    %c24_i32_41 = arith.constant 24 : i32
    %c0_i32_42 = arith.constant 0 : i32
    %44 = tpu.memref_slice %arg0[%c24_i32_41, %c0_i32_42] : memref<64x32xf32, #tpu.memory_space<any>> -> memref<8x32xf32, #tpu.memory_space<any>>
    %c24_i32_43 = arith.constant 24 : i32
    %c0_i32_44 = arith.constant 0 : i32
    %45 = tpu.memref_slice %arg1[%c24_i32_43, %c0_i32_44] : memref<64x32xf32, #tpu.memory_space<any>> -> memref<8x32xf32, #tpu.memory_space<any>>
    %46 = tpu.memref_slice %arg2[%c3_i32_40] : memref<8x!tpu.dma_semaphore, #tpu.memory_space<semaphore_mem>> -> memref<1x!tpu.dma_semaphore, #tpu.memory_space<semaphore_mem>>
    %47 = tpu.memref_squeeze %46 : memref<1x!tpu.dma_semaphore, #tpu.memory_space<semaphore_mem>> -> memref<!tpu.dma_semaphore, #tpu.memory_space<semaphore_mem>>
    tpu.wait_dma2 semaphore(%47 : memref<!tpu.dma_semaphore, #tpu.memory_space<semaphore_mem>>) src(%44 : memref<8x32xf32, #tpu.memory_space<any>>) dst(%45 : memref<8x32xf32, #tpu.memory_space<any>>)
    %c4_i32_45 = arith.constant 4 : i32
    %c32_i32_46 = arith.constant 32 : i32
    %c0_i32_47 = arith.constant 0 : i32
    %48 = tpu.memref_slice %arg0[%c32_i32_46, %c0_i32_47] : memref<64x32xf32, #tpu.memory_space<any>> -> memref<8x32xf32, #tpu.memory_space<any>>
    %c32_i32_48 = arith.constant 32 : i32
    %c0_i32_49 = arith.constant 0 : i32
    %49 = tpu.memref_slice %arg1[%c32_i32_48, %c0_i32_49] : memref<64x32xf32, #tpu.memory_space<any>> -> memref<8x32xf32, #tpu.memory_space<any>>
    %50 = tpu.memref_slice %arg2[%c4_i32_45] : memref<8x!tpu.dma_semaphore, #tpu.memory_space<semaphore_mem>> -> memref<1x!tpu.dma_semaphore, #tpu.memory_space<semaphore_mem>>
    %51 = tpu.memref_squeeze %50 : memref<1x!tpu.dma_semaphore, #tpu.memory_space<semaphore_mem>> -> memref<!tpu.dma_semaphore, #tpu.memory_space<semaphore_mem>>
    tpu.wait_dma2 semaphore(%51 : memref<!tpu.dma_semaphore, #tpu.memory_space<semaphore_mem>>) src(%48 : memref<8x32xf32, #tpu.memory_space<any>>) dst(%49 : memref<8x32xf32, #tpu.memory_space<any>>)
    %c5_i32_50 = arith.constant 5 : i32
    %c40_i32_51 = arith.constant 40 : i32
    %c0_i32_52 = arith.constant 0 : i32
    %52 = tpu.memref_slice %arg0[%c40_i32_51, %c0_i32_52] : memref<64x32xf32, #tpu.memory_space<any>> -> memref<8x32xf32, #tpu.memory_space<any>>
    %c40_i32_53 = arith.constant 40 : i32
    %c0_i32_54 = arith.constant 0 : i32
    %53 = tpu.memref_slice %arg1[%c40_i32_53, %c0_i32_54] : memref<64x32xf32, #tpu.memory_space<any>> -> memref<8x32xf32, #tpu.memory_space<any>>
    %54 = tpu.memref_slice %arg2[%c5_i32_50] : memref<8x!tpu.dma_semaphore, #tpu.memory_space<semaphore_mem>> -> memref<1x!tpu.dma_semaphore, #tpu.memory_space<semaphore_mem>>
    %55 = tpu.memref_squeeze %54 : memref<1x!tpu.dma_semaphore, #tpu.memory_space<semaphore_mem>> -> memref<!tpu.dma_semaphore, #tpu.memory_space<semaphore_mem>>
    tpu.wait_dma2 semaphore(%55 : memref<!tpu.dma_semaphore, #tpu.memory_space<semaphore_mem>>) src(%52 : memref<8x32xf32, #tpu.memory_space<any>>) dst(%53 : memref<8x32xf32, #tpu.memory_space<any>>)
    %c6_i32_55 = arith.constant 6 : i32
    %c48_i32_56 = arith.constant 48 : i32
    %c0_i32_57 = arith.constant 0 : i32
    %56 = tpu.memref_slice %arg0[%c48_i32_56, %c0_i32_57] : memref<64x32xf32, #tpu.memory_space<any>> -> memref<8x32xf32, #tpu.memory_space<any>>
    %c48_i32_58 = arith.constant 48 : i32
    %c0_i32_59 = arith.constant 0 : i32
    %57 = tpu.memref_slice %arg1[%c48_i32_58, %c0_i32_59] : memref<64x32xf32, #tpu.memory_space<any>> -> memref<8x32xf32, #tpu.memory_space<any>>
    %58 = tpu.memref_slice %arg2[%c6_i32_55] : memref<8x!tpu.dma_semaphore, #tpu.memory_space<semaphore_mem>> -> memref<1x!tpu.dma_semaphore, #tpu.memory_space<semaphore_mem>>
    %59 = tpu.memref_squeeze %58 : memref<1x!tpu.dma_semaphore, #tpu.memory_space<semaphore_mem>> -> memref<!tpu.dma_semaphore, #tpu.memory_space<semaphore_mem>>
    tpu.wait_dma2 semaphore(%59 : memref<!tpu.dma_semaphore, #tpu.memory_space<semaphore_mem>>) src(%56 : memref<8x32xf32, #tpu.memory_space<any>>) dst(%57 : memref<8x32xf32, #tpu.memory_space<any>>)
    %c7_i32_60 = arith.constant 7 : i32
    %c56_i32_61 = arith.constant 56 : i32
    %c0_i32_62 = arith.constant 0 : i32
    %60 = tpu.memref_slice %arg0[%c56_i32_61, %c0_i32_62] : memref<64x32xf32, #tpu.memory_space<any>> -> memref<8x32xf32, #tpu.memory_space<any>>
    %c56_i32_63 = arith.constant 56 : i32
    %c0_i32_64 = arith.constant 0 : i32
    %61 = tpu.memref_slice %arg1[%c56_i32_63, %c0_i32_64] : memref<64x32xf32, #tpu.memory_space<any>> -> memref<8x32xf32, #tpu.memory_space<any>>
    %62 = tpu.memref_slice %arg2[%c7_i32_60] : memref<8x!tpu.dma_semaphore, #tpu.memory_space<semaphore_mem>> -> memref<1x!tpu.dma_semaphore, #tpu.memory_space<semaphore_mem>>
    %63 = tpu.memref_squeeze %62 : memref<1x!tpu.dma_semaphore, #tpu.memory_space<semaphore_mem>> -> memref<!tpu.dma_semaphore, #tpu.memory_space<semaphore_mem>>
    tpu.wait_dma2 semaphore(%63 : memref<!tpu.dma_semaphore, #tpu.memory_space<semaphore_mem>>) src(%60 : memref<8x32xf32, #tpu.memory_space<any>>) dst(%61 : memref<8x32xf32, #tpu.memory_space<any>>)
    return
  }
}

</mosaic_0001>

<llo_original>
// kernel: tpu_custom_call.1
$region0: #{tpu_custom_call.1}
  #allocation0 [shape = 'u32[]', space=smem, size = 0x4, offset = 0x4, fixed_abs, tag = 'smem constant byte address 0x4 - core index']
  #allocation1 [shape = 'u32[144,128]{1,0:T(1,128)}', space=vmem, size = 0x12000, scoped, tag = 'internal scratch']
  #allocation2 [shape = 's32[8]{0}', space=sflag, size = 0x20, scoped, tag = 'scratch operand']
  #allocation3 [shape = 's32[]', space=sflag, size = 0x4, offset = 0, fixed_abs, tag = 'sflag constant byte address 0x0 - dummy sync flag']
  #allocation4 [shape = 's32[]', space=sflag, size = 0x4, offset = 0, fixed_abs, tag = 'sflag constant byte address 0x0 - dummy sync flag']
  #allocation5 [shape = 's32[]', space=sflag, size = 0x4, offset = 0, fixed_abs, tag = 'sflag constant byte address 0x0 - dummy sync flag']
  #allocation6 [shape = 's32[]', space=sflag, size = 0x4, offset = 0, fixed_abs, tag = 'sflag constant byte address 0x0 - dummy sync flag']
  #allocation7 [shape = 's32[]', space=sflag, size = 0x4, offset = 0, fixed_abs, tag = 'sflag constant byte address 0x0 - dummy sync flag']
  #allocation8 [shape = 's32[]', space=sflag, size = 0x4, offset = 0, fixed_abs, tag = 'sflag constant byte address 0x0 - dummy sync flag']
  #allocation9 [shape = 's32[]', space=sflag, size = 0x4, offset = 0, fixed_abs, tag = 'sflag constant byte address 0x0 - dummy sync flag']
  #allocation10 [shape = 's32[]', space=sflag, size = 0x4, offset = 0, fixed_abs, tag = 'sflag constant byte address 0x0 - dummy sync flag']
  %s0 = inlined_call_operand.vmem [shape: f32[64,32], index: 0, kind: input, shape index: {}]
  %s1 = inlined_call_operand.vmem [shape: f32[64,32], index: 1, kind: output, shape index: {}]
  %s2 = sld [smem:[#allocation0]]
  $region274: #{tpu_custom_call.1} parent=0
    _
  %s4 = ssub.s32 1, %s2
  %s5 = scalar_select 0, %s4, %s2
  %p7 = scmp.lt.u32.totalorder 8, 8
  %p8 = pneg %p7
  // Predicated region
  $region2: #{tpu_custom_call.1} parent=0 // pred_check
    _
  $region3: #{tpu_custom_call.1} parent=0 // pred_check_branch
    %10 = sbr.rel (%p7) target = $region5
  $region4: #{tpu_custom_call.1} parent=0 // pred_region
    %s25 = sand.u32 8, 7
    %p26 = scmp.eq.s32.totalorder %s25, 0
    // Predicated region
    $region17: #{tpu_custom_call.1} parent=4 // pred_check
      %p27 = pneg %p26
    $region18: #{tpu_custom_call.1} parent=4 // pred_check_branch
      %29 = sbr.rel (%p27) target = $region20
    $region19: #{tpu_custom_call.1} parent=4 // pred_region
      loop: start=0, step=1, limit=1
      $region21: #{tpu_custom_call.1} parent=19 // loop_pre_header
        _
      $region22: #{tpu_custom_call.1} parent=19 // loop_header
        %s31 = sphi 0, %s35
        %p32 = scmp.ge.s32.totalorder %s31, 1
        %s36 = sphi %s0, %s0
        %s37 = sphi %s1, %s1
      $region23: #{tpu_custom_call.1} parent=19 // loop_header_branch
        %34 = sbr.rel (%p32) target = $region27
      $region24: #{tpu_custom_call.1} parent=19 // loop_body
        %v38 = vld [vmem:[%s36] sm:$0xff]
        %39 = vst [vmem:[%s37] sm:$0xff] %v38
      $region25: #{tpu_custom_call.1} parent=19 // loop_footer
        %s35 = sadd.s32 1, %s31
      $region26: #{tpu_custom_call.1} parent=19 // loop_footer_branch
        %30 = sbr.rel target = $region22
      $region27: #{tpu_custom_call.1} parent=19 // loop_exit
        _
    $region20: #{tpu_custom_call.1} parent=4 // pred_fallthru
      _
    %p40 = pneg %p26
    // Predicated region
    $region28: #{tpu_custom_call.1} parent=4 // pred_check
      _
    $region29: #{tpu_custom_call.1} parent=4 // pred_check_branch
      %42 = sbr.rel (%p26) target = $region31
    $region30: #{tpu_custom_call.1} parent=4 // pred_region
      %s43 = sand.u32 8, 7
    $region31: #{tpu_custom_call.1} parent=4 // pred_fallthru
      _
  $region5: #{tpu_custom_call.1} parent=0 // pred_fallthru
    _
  // Predicated region
  $region6: #{tpu_custom_call.1} parent=0 // pred_check
    %p11 = pneg %p7
  $region7: #{tpu_custom_call.1} parent=0 // pred_check_branch
    %13 = sbr.rel (%p11) target = $region9
  $region8: #{tpu_custom_call.1} parent=0 // pred_region
    %s14 = sshllo.u32 0, 8
    loop: start=0, step=1, limit=1
    $region10: #{tpu_custom_call.1} parent=8 // loop_pre_header
      _
    $region11: #{tpu_custom_call.1} parent=8 // loop_header
      %s16 = sphi 0, %s20
      %p17 = scmp.ge.s32.totalorder %s16, 1
      %s21 = sphi %s0, %s0
      %s22 = sphi %s1, %s1
    $region12: #{tpu_custom_call.1} parent=8 // loop_header_branch
      %19 = sbr.rel (%p17) target = $region16
    $region13: #{tpu_custom_call.1} parent=8 // loop_body
      %v23 = vld [vmem:[%s21] sm:%s14]
      %24 = vst [vmem:[%s22] sm:%s14] %v23
    $region14: #{tpu_custom_call.1} parent=8 // loop_footer
      %s20 = sadd.s32 1, %s16
    $region15: #{tpu_custom_call.1} parent=8 // loop_footer_branch
      %15 = sbr.rel target = $region11
    $region16: #{tpu_custom_call.1} parent=8 // loop_exit
      _
  $region9: #{tpu_custom_call.1} parent=0 // pred_fallthru
    _
  // Predicated region
  $region32: #{tpu_custom_call.1} parent=0 // pred_check
    _
  $region33: #{tpu_custom_call.1} parent=0 // pred_check_branch
    %46 = sbr.rel (0) target = $region35
  $region34: #{tpu_custom_call.1} parent=0 // pred_region
    %47 = vsyncadd [#allocation2], 128
  $region35: #{tpu_custom_call.1} parent=0 // pred_fallthru
    _
  %s48 = scalar_lea.vmem %s0, 8
  %s49 = scalar_lea.vmem %s1, 8
  %s50 = scalar_lea.sflag [#allocation2], 1
  %p52 = scmp.lt.u32.totalorder 8, 8
  %p53 = pneg %p52
  // Predicated region
  $region36: #{tpu_custom_call.1} parent=0 // pred_check
    _
  $region37: #{tpu_custom_call.1} parent=0 // pred_check_branch
    %55 = sbr.rel (%p52) target = $region39
  $region38: #{tpu_custom_call.1} parent=0 // pred_region
    %s70 = sand.u32 8, 7
    %p71 = scmp.eq.s32.totalorder %s70, 0
    // Predicated region
    $region51: #{tpu_custom_call.1} parent=38 // pred_check
      %p72 = pneg %p71
    $region52: #{tpu_custom_call.1} parent=38 // pred_check_branch
      %74 = sbr.rel (%p72) target = $region54
    $region53: #{tpu_custom_call.1} parent=38 // pred_region
      loop: start=0, step=1, limit=1
      $region55: #{tpu_custom_call.1} parent=53 // loop_pre_header
        _
      $region56: #{tpu_custom_call.1} parent=53 // loop_header
        %s76 = sphi 0, %s80
        %p77 = scmp.ge.s32.totalorder %s76, 1
        %s81 = sphi %s48, %s48
        %s82 = sphi %s49, %s49
      $region57: #{tpu_custom_call.1} parent=53 // loop_header_branch
        %79 = sbr.rel (%p77) target = $region61
      $region58: #{tpu_custom_call.1} parent=53 // loop_body
        %v83 = vld [vmem:[%s81] sm:$0xff]
        %84 = vst [vmem:[%s82] sm:$0xff] %v83
      $region59: #{tpu_custom_call.1} parent=53 // loop_footer
        %s80 = sadd.s32 1, %s76
      $region60: #{tpu_custom_call.1} parent=53 // loop_footer_branch
        %75 = sbr.rel target = $region56
      $region61: #{tpu_custom_call.1} parent=53 // loop_exit
        _
    $region54: #{tpu_custom_call.1} parent=38 // pred_fallthru
      _
    %p85 = pneg %p71
    // Predicated region
    $region62: #{tpu_custom_call.1} parent=38 // pred_check
      _
    $region63: #{tpu_custom_call.1} parent=38 // pred_check_branch
      %87 = sbr.rel (%p71) target = $region65
    $region64: #{tpu_custom_call.1} parent=38 // pred_region
      %s88 = sand.u32 8, 7
    $region65: #{tpu_custom_call.1} parent=38 // pred_fallthru
      _
  $region39: #{tpu_custom_call.1} parent=0 // pred_fallthru
    _
  // Predicated region
  $region40: #{tpu_custom_call.1} parent=0 // pred_check
    %p56 = pneg %p52
  $region41: #{tpu_custom_call.1} parent=0 // pred_check_branch
    %58 = sbr.rel (%p56) target = $region43
  $region42: #{tpu_custom_call.1} parent=0 // pred_region
    %s59 = sshllo.u32 0, 8
    loop: start=0, step=1, limit=1
    $region44: #{tpu_custom_call.1} parent=42 // loop_pre_header
      _
    $region45: #{tpu_custom_call.1} parent=42 // loop_header
      %s61 = sphi 0, %s65
      %p62 = scmp.ge.s32.totalorder %s61, 1
      %s66 = sphi %s48, %s48
      %s67 = sphi %s49, %s49
    $region46: #{tpu_custom_call.1} parent=42 // loop_header_branch
      %64 = sbr.rel (%p62) target = $region50
    $region47: #{tpu_custom_call.1} parent=42 // loop_body
      %v68 = vld [vmem:[%s66] sm:%s59]
      %69 = vst [vmem:[%s67] sm:%s59] %v68
    $region48: #{tpu_custom_call.1} parent=42 // loop_footer
      %s65 = sadd.s32 1, %s61
    $region49: #{tpu_custom_call.1} parent=42 // loop_footer_branch
      %60 = sbr.rel target = $region45
    $region50: #{tpu_custom_call.1} parent=42 // loop_exit
      _
  $region43: #{tpu_custom_call.1} parent=0 // pred_fallthru
    _
  // Predicated region
  $region66: #{tpu_custom_call.1} parent=0 // pred_check
    _
  $region67: #{tpu_custom_call.1} parent=0 // pred_check_branch
    %91 = sbr.rel (0) target = $region69
  $region68: #{tpu_custom_call.1} parent=0 // pred_region
    %92 = vsyncadd %s50, 128
  $region69: #{tpu_custom_call.1} parent=0 // pred_fallthru
    _
  %s93 = scalar_lea.vmem %s0, 16
  %s94 = scalar_lea.vmem %s1, 16
  %s95 = scalar_lea.sflag [#allocation2], 2
  %p97 = scmp.lt.u32.totalorder 8, 8
  %p98 = pneg %p97
  // Predicated region
  $region70: #{tpu_custom_call.1} parent=0 // pred_check
    _
  $region71: #{tpu_custom_call.1} parent=0 // pred_check_branch
    %100 = sbr.rel (%p97) target = $region73
  $region72: #{tpu_custom_call.1} parent=0 // pred_region
    %s115 = sand.u32 8, 7
    %p116 = scmp.eq.s32.totalorder %s115, 0
    // Predicated region
    $region85: #{tpu_custom_call.1} parent=72 // pred_check
      %p117 = pneg %p116
    $region86: #{tpu_custom_call.1} parent=72 // pred_check_branch
      %119 = sbr.rel (%p117) target = $region88
    $region87: #{tpu_custom_call.1} parent=72 // pred_region
      loop: start=0, step=1, limit=1
      $region89: #{tpu_custom_call.1} parent=87 // loop_pre_header
        _
      $region90: #{tpu_custom_call.1} parent=87 // loop_header
        %s121 = sphi 0, %s125
        %p122 = scmp.ge.s32.totalorder %s121, 1
        %s126 = sphi %s93, %s93
        %s127 = sphi %s94, %s94
      $region91: #{tpu_custom_call.1} parent=87 // loop_header_branch
        %124 = sbr.rel (%p122) target = $region95
      $region92: #{tpu_custom_call.1} parent=87 // loop_body
        %v128 = vld [vmem:[%s126] sm:$0xff]
        %129 = vst [vmem:[%s127] sm:$0xff] %v128
      $region93: #{tpu_custom_call.1} parent=87 // loop_footer
        %s125 = sadd.s32 1, %s121
      $region94: #{tpu_custom_call.1} parent=87 // loop_footer_branch
        %120 = sbr.rel target = $region90
      $region95: #{tpu_custom_call.1} parent=87 // loop_exit
        _
    $region88: #{tpu_custom_call.1} parent=72 // pred_fallthru
      _
    %p130 = pneg %p116
    // Predicated region
    $region96: #{tpu_custom_call.1} parent=72 // pred_check
      _
    $region97: #{tpu_custom_call.1} parent=72 // pred_check_branch
      %132 = sbr.rel (%p116) target = $region99
    $region98: #{tpu_custom_call.1} parent=72 // pred_region
      %s133 = sand.u32 8, 7
    $region99: #{tpu_custom_call.1} parent=72 // pred_fallthru
      _
  $region73: #{tpu_custom_call.1} parent=0 // pred_fallthru
    _
  // Predicated region
  $region74: #{tpu_custom_call.1} parent=0 // pred_check
    %p101 = pneg %p97
  $region75: #{tpu_custom_call.1} parent=0 // pred_check_branch
    %103 = sbr.rel (%p101) target = $region77
  $region76: #{tpu_custom_call.1} parent=0 // pred_region
    %s104 = sshllo.u32 0, 8
    loop: start=0, step=1, limit=1
    $region78: #{tpu_custom_call.1} parent=76 // loop_pre_header
      _
    $region79: #{tpu_custom_call.1} parent=76 // loop_header
      %s106 = sphi 0, %s110
      %p107 = scmp.ge.s32.totalorder %s106, 1
      %s111 = sphi %s93, %s93
      %s112 = sphi %s94, %s94
    $region80: #{tpu_custom_call.1} parent=76 // loop_header_branch
      %109 = sbr.rel (%p107) target = $region84
    $region81: #{tpu_custom_call.1} parent=76 // loop_body
      %v113 = vld [vmem:[%s111] sm:%s104]
      %114 = vst [vmem:[%s112] sm:%s104] %v113
    $region82: #{tpu_custom_call.1} parent=76 // loop_footer
      %s110 = sadd.s32 1, %s106
    $region83: #{tpu_custom_call.1} parent=76 // loop_footer_branch
      %105 = sbr.rel target = $region79
    $region84: #{tpu_custom_call.1} parent=76 // loop_exit
      _
  $region77: #{tpu_custom_call.1} parent=0 // pred_fallthru
    _
  // Predicated region
  $region100: #{tpu_custom_call.1} parent=0 // pred_check
    _
  $region101: #{tpu_custom_call.1} parent=0 // pred_check_branch
    %136 = sbr.rel (0) target = $region103
  $region102: #{tpu_custom_call.1} parent=0 // pred_region
    %137 = vsyncadd %s95, 128
  $region103: #{tpu_custom_call.1} parent=0 // pred_fallthru
    _
  %s138 = scalar_lea.vmem %s0, 24
  %s139 = scalar_lea.vmem %s1, 24
  %s140 = scalar_lea.sflag [#allocation2], 3
  %p142 = scmp.lt.u32.totalorder 8, 8
  %p143 = pneg %p142
  // Predicated region
  $region104: #{tpu_custom_call.1} parent=0 // pred_check
    _
  $region105: #{tpu_custom_call.1} parent=0 // pred_check_branch
    %145 = sbr.rel (%p142) target = $region107
  $region106: #{tpu_custom_call.1} parent=0 // pred_region
    %s160 = sand.u32 8, 7
    %p161 = scmp.eq.s32.totalorder %s160, 0
    // Predicated region
    $region119: #{tpu_custom_call.1} parent=106 // pred_check
      %p162 = pneg %p161
    $region120: #{tpu_custom_call.1} parent=106 // pred_check_branch
      %164 = sbr.rel (%p162) target = $region122
    $region121: #{tpu_custom_call.1} parent=106 // pred_region
      loop: start=0, step=1, limit=1
      $region123: #{tpu_custom_call.1} parent=121 // loop_pre_header
        _
      $region124: #{tpu_custom_call.1} parent=121 // loop_header
        %s166 = sphi 0, %s170
        %p167 = scmp.ge.s32.totalorder %s166, 1
        %s171 = sphi %s138, %s138
        %s172 = sphi %s139, %s139
      $region125: #{tpu_custom_call.1} parent=121 // loop_header_branch
        %169 = sbr.rel (%p167) target = $region129
      $region126: #{tpu_custom_call.1} parent=121 // loop_body
        %v173 = vld [vmem:[%s171] sm:$0xff]
        %174 = vst [vmem:[%s172] sm:$0xff] %v173
      $region127: #{tpu_custom_call.1} parent=121 // loop_footer
        %s170 = sadd.s32 1, %s166
      $region128: #{tpu_custom_call.1} parent=121 // loop_footer_branch
        %165 = sbr.rel target = $region124
      $region129: #{tpu_custom_call.1} parent=121 // loop_exit
        _
    $region122: #{tpu_custom_call.1} parent=106 // pred_fallthru
      _
    %p175 = pneg %p161
    // Predicated region
    $region130: #{tpu_custom_call.1} parent=106 // pred_check
      _
    $region131: #{tpu_custom_call.1} parent=106 // pred_check_branch
      %177 = sbr.rel (%p161) target = $region133
    $region132: #{tpu_custom_call.1} parent=106 // pred_region
      %s178 = sand.u32 8, 7
    $region133: #{tpu_custom_call.1} parent=106 // pred_fallthru
      _
  $region107: #{tpu_custom_call.1} parent=0 // pred_fallthru
    _
  // Predicated region
  $region108: #{tpu_custom_call.1} parent=0 // pred_check
    %p146 = pneg %p142
  $region109: #{tpu_custom_call.1} parent=0 // pred_check_branch
    %148 = sbr.rel (%p146) target = $region111
  $region110: #{tpu_custom_call.1} parent=0 // pred_region
    %s149 = sshllo.u32 0, 8
    loop: start=0, step=1, limit=1
    $region112: #{tpu_custom_call.1} parent=110 // loop_pre_header
      _
    $region113: #{tpu_custom_call.1} parent=110 // loop_header
      %s151 = sphi 0, %s155
      %p152 = scmp.ge.s32.totalorder %s151, 1
      %s156 = sphi %s138, %s138
      %s157 = sphi %s139, %s139
    $region114: #{tpu_custom_call.1} parent=110 // loop_header_branch
      %154 = sbr.rel (%p152) target = $region118
    $region115: #{tpu_custom_call.1} parent=110 // loop_body
      %v158 = vld [vmem:[%s156] sm:%s149]
      %159 = vst [vmem:[%s157] sm:%s149] %v158
    $region116: #{tpu_custom_call.1} parent=110 // loop_footer
      %s155 = sadd.s32 1, %s151
    $region117: #{tpu_custom_call.1} parent=110 // loop_footer_branch
      %150 = sbr.rel target = $region113
    $region118: #{tpu_custom_call.1} parent=110 // loop_exit
      _
  $region111: #{tpu_custom_call.1} parent=0 // pred_fallthru
    _
  // Predicated region
  $region134: #{tpu_custom_call.1} parent=0 // pred_check
    _
  $region135: #{tpu_custom_call.1} parent=0 // pred_check_branch
    %181 = sbr.rel (0) target = $region137
  $region136: #{tpu_custom_call.1} parent=0 // pred_region
    %182 = vsyncadd %s140, 128
  $region137: #{tpu_custom_call.1} parent=0 // pred_fallthru
    _
  %s183 = scalar_lea.vmem %s0, 32
  %s184 = scalar_lea.vmem %s1, 32
  %s185 = scalar_lea.sflag [#allocation2], 4
  %p187 = scmp.lt.u32.totalorder 8, 8
  %p188 = pneg %p187
  // Predicated region
  $region138: #{tpu_custom_call.1} parent=0 // pred_check
    _
  $region139: #{tpu_custom_call.1} parent=0 // pred_check_branch
    %190 = sbr.rel (%p187) target = $region141
  $region140: #{tpu_custom_call.1} parent=0 // pred_region
    %s205 = sand.u32 8, 7
    %p206 = scmp.eq.s32.totalorder %s205, 0
    // Predicated region
    $region153: #{tpu_custom_call.1} parent=140 // pred_check
      %p207 = pneg %p206
    $region154: #{tpu_custom_call.1} parent=140 // pred_check_branch
      %209 = sbr.rel (%p207) target = $region156
    $region155: #{tpu_custom_call.1} parent=140 // pred_region
      loop: start=0, step=1, limit=1
      $region157: #{tpu_custom_call.1} parent=155 // loop_pre_header
        _
      $region158: #{tpu_custom_call.1} parent=155 // loop_header
        %s211 = sphi 0, %s215
        %p212 = scmp.ge.s32.totalorder %s211, 1
        %s216 = sphi %s183, %s183
        %s217 = sphi %s184, %s184
      $region159: #{tpu_custom_call.1} parent=155 // loop_header_branch
        %214 = sbr.rel (%p212) target = $region163
      $region160: #{tpu_custom_call.1} parent=155 // loop_body
        %v218 = vld [vmem:[%s216] sm:$0xff]
        %219 = vst [vmem:[%s217] sm:$0xff] %v218
      $region161: #{tpu_custom_call.1} parent=155 // loop_footer
        %s215 = sadd.s32 1, %s211
      $region162: #{tpu_custom_call.1} parent=155 // loop_footer_branch
        %210 = sbr.rel target = $region158
      $region163: #{tpu_custom_call.1} parent=155 // loop_exit
        _
    $region156: #{tpu_custom_call.1} parent=140 // pred_fallthru
      _
    %p220 = pneg %p206
    // Predicated region
    $region164: #{tpu_custom_call.1} parent=140 // pred_check
      _
    $region165: #{tpu_custom_call.1} parent=140 // pred_check_branch
      %222 = sbr.rel (%p206) target = $region167
    $region166: #{tpu_custom_call.1} parent=140 // pred_region
      %s223 = sand.u32 8, 7
    $region167: #{tpu_custom_call.1} parent=140 // pred_fallthru
      _
  $region141: #{tpu_custom_call.1} parent=0 // pred_fallthru
    _
  // Predicated region
  $region142: #{tpu_custom_call.1} parent=0 // pred_check
    %p191 = pneg %p187
  $region143: #{tpu_custom_call.1} parent=0 // pred_check_branch
    %193 = sbr.rel (%p191) target = $region145
  $region144: #{tpu_custom_call.1} parent=0 // pred_region
    %s194 = sshllo.u32 0, 8
    loop: start=0, step=1, limit=1
    $region146: #{tpu_custom_call.1} parent=144 // loop_pre_header
      _
    $region147: #{tpu_custom_call.1} parent=144 // loop_header
      %s196 = sphi 0, %s200
      %p197 = scmp.ge.s32.totalorder %s196, 1
      %s201 = sphi %s183, %s183
      %s202 = sphi %s184, %s184
    $region148: #{tpu_custom_call.1} parent=144 // loop_header_branch
      %199 = sbr.rel (%p197) target = $region152
    $region149: #{tpu_custom_call.1} parent=144 // loop_body
      %v203 = vld [vmem:[%s201] sm:%s194]
      %204 = vst [vmem:[%s202] sm:%s194] %v203
    $region150: #{tpu_custom_call.1} parent=144 // loop_footer
      %s200 = sadd.s32 1, %s196
    $region151: #{tpu_custom_call.1} parent=144 // loop_footer_branch
      %195 = sbr.rel target = $region147
    $region152: #{tpu_custom_call.1} parent=144 // loop_exit
      _
  $region145: #{tpu_custom_call.1} parent=0 // pred_fallthru
    _
  // Predicated region
  $region168: #{tpu_custom_call.1} parent=0 // pred_check
    _
  $region169: #{tpu_custom_call.1} parent=0 // pred_check_branch
    %226 = sbr.rel (0) target = $region171
  $region170: #{tpu_custom_call.1} parent=0 // pred_region
    %227 = vsyncadd %s185, 128
  $region171: #{tpu_custom_call.1} parent=0 // pred_fallthru
    _
  %s228 = scalar_lea.vmem %s0, 40
  %s229 = scalar_lea.vmem %s1, 40
  %s230 = scalar_lea.sflag [#allocation2], 5
  %p232 = scmp.lt.u32.totalorder 8, 8
  %p233 = pneg %p232
  // Predicated region
  $region172: #{tpu_custom_call.1} parent=0 // pred_check
    _
  $region173: #{tpu_custom_call.1} parent=0 // pred_check_branch
    %235 = sbr.rel (%p232) target = $region175
  $region174: #{tpu_custom_call.1} parent=0 // pred_region
    %s250 = sand.u32 8, 7
    %p251 = scmp.eq.s32.totalorder %s250, 0
    // Predicated region
    $region187: #{tpu_custom_call.1} parent=174 // pred_check
      %p252 = pneg %p251
    $region188: #{tpu_custom_call.1} parent=174 // pred_check_branch
      %254 = sbr.rel (%p252) target = $region190
    $region189: #{tpu_custom_call.1} parent=174 // pred_region
      loop: start=0, step=1, limit=1
      $region191: #{tpu_custom_call.1} parent=189 // loop_pre_header
        _
      $region192: #{tpu_custom_call.1} parent=189 // loop_header
        %s256 = sphi 0, %s260
        %p257 = scmp.ge.s32.totalorder %s256, 1
        %s261 = sphi %s228, %s228
        %s262 = sphi %s229, %s229
      $region193: #{tpu_custom_call.1} parent=189 // loop_header_branch
        %259 = sbr.rel (%p257) target = $region197
      $region194: #{tpu_custom_call.1} parent=189 // loop_body
        %v263 = vld [vmem:[%s261] sm:$0xff]
        %264 = vst [vmem:[%s262] sm:$0xff] %v263
      $region195: #{tpu_custom_call.1} parent=189 // loop_footer
        %s260 = sadd.s32 1, %s256
      $region196: #{tpu_custom_call.1} parent=189 // loop_footer_branch
        %255 = sbr.rel target = $region192
      $region197: #{tpu_custom_call.1} parent=189 // loop_exit
        _
    $region190: #{tpu_custom_call.1} parent=174 // pred_fallthru
      _
    %p265 = pneg %p251
    // Predicated region
    $region198: #{tpu_custom_call.1} parent=174 // pred_check
      _
    $region199: #{tpu_custom_call.1} parent=174 // pred_check_branch
      %267 = sbr.rel (%p251) target = $region201
    $region200: #{tpu_custom_call.1} parent=174 // pred_region
      %s268 = sand.u32 8, 7
    $region201: #{tpu_custom_call.1} parent=174 // pred_fallthru
      _
  $region175: #{tpu_custom_call.1} parent=0 // pred_fallthru
    _
  // Predicated region
  $region176: #{tpu_custom_call.1} parent=0 // pred_check
    %p236 = pneg %p232
  $region177: #{tpu_custom_call.1} parent=0 // pred_check_branch
    %238 = sbr.rel (%p236) target = $region179
  $region178: #{tpu_custom_call.1} parent=0 // pred_region
    %s239 = sshllo.u32 0, 8
    loop: start=0, step=1, limit=1
    $region180: #{tpu_custom_call.1} parent=178 // loop_pre_header
      _
    $region181: #{tpu_custom_call.1} parent=178 // loop_header
      %s241 = sphi 0, %s245
      %p242 = scmp.ge.s32.totalorder %s241, 1
      %s246 = sphi %s228, %s228
      %s247 = sphi %s229, %s229
    $region182: #{tpu_custom_call.1} parent=178 // loop_header_branch
      %244 = sbr.rel (%p242) target = $region186
    $region183: #{tpu_custom_call.1} parent=178 // loop_body
      %v248 = vld [vmem:[%s246] sm:%s239]
      %249 = vst [vmem:[%s247] sm:%s239] %v248
    $region184: #{tpu_custom_call.1} parent=178 // loop_footer
      %s245 = sadd.s32 1, %s241
    $region185: #{tpu_custom_call.1} parent=178 // loop_footer_branch
      %240 = sbr.rel target = $region181
    $region186: #{tpu_custom_call.1} parent=178 // loop_exit
      _
  $region179: #{tpu_custom_call.1} parent=0 // pred_fallthru
    _
  // Predicated region
  $region202: #{tpu_custom_call.1} parent=0 // pred_check
    _
  $region203: #{tpu_custom_call.1} parent=0 // pred_check_branch
    %271 = sbr.rel (0) target = $region205
  $region204: #{tpu_custom_call.1} parent=0 // pred_region
    %272 = vsyncadd %s230, 128
  $region205: #{tpu_custom_call.1} parent=0 // pred_fallthru
    _
  %s273 = scalar_lea.vmem %s0, 48
  %s274 = scalar_lea.vmem %s1, 48
  %s275 = scalar_lea.sflag [#allocation2], 6
  %p277 = scmp.lt.u32.totalorder 8, 8
  %p278 = pneg %p277
  // Predicated region
  $region206: #{tpu_custom_call.1} parent=0 // pred_check
    _
  $region207: #{tpu_custom_call.1} parent=0 // pred_check_branch
    %280 = sbr.rel (%p277) target = $region209
  $region208: #{tpu_custom_call.1} parent=0 // pred_region
    %s295 = sand.u32 8, 7
    %p296 = scmp.eq.s32.totalorder %s295, 0
    // Predicated region
    $region221: #{tpu_custom_call.1} parent=208 // pred_check
      %p297 = pneg %p296
    $region222: #{tpu_custom_call.1} parent=208 // pred_check_branch
      %299 = sbr.rel (%p297) target = $region224
    $region223: #{tpu_custom_call.1} parent=208 // pred_region
      loop: start=0, step=1, limit=1
      $region225: #{tpu_custom_call.1} parent=223 // loop_pre_header
        _
      $region226: #{tpu_custom_call.1} parent=223 // loop_header
        %s301 = sphi 0, %s305
        %p302 = scmp.ge.s32.totalorder %s301, 1
        %s306 = sphi %s273, %s273
        %s307 = sphi %s274, %s274
      $region227: #{tpu_custom_call.1} parent=223 // loop_header_branch
        %304 = sbr.rel (%p302) target = $region231
      $region228: #{tpu_custom_call.1} parent=223 // loop_body
        %v308 = vld [vmem:[%s306] sm:$0xff]
        %309 = vst [vmem:[%s307] sm:$0xff] %v308
      $region229: #{tpu_custom_call.1} parent=223 // loop_footer
        %s305 = sadd.s32 1, %s301
      $region230: #{tpu_custom_call.1} parent=223 // loop_footer_branch
        %300 = sbr.rel target = $region226
      $region231: #{tpu_custom_call.1} parent=223 // loop_exit
        _
    $region224: #{tpu_custom_call.1} parent=208 // pred_fallthru
      _
    %p310 = pneg %p296
    // Predicated region
    $region232: #{tpu_custom_call.1} parent=208 // pred_check
      _
    $region233: #{tpu_custom_call.1} parent=208 // pred_check_branch
      %312 = sbr.rel (%p296) target = $region235
    $region234: #{tpu_custom_call.1} parent=208 // pred_region
      %s313 = sand.u32 8, 7
    $region235: #{tpu_custom_call.1} parent=208 // pred_fallthru
      _
  $region209: #{tpu_custom_call.1} parent=0 // pred_fallthru
    _
  // Predicated region
  $region210: #{tpu_custom_call.1} parent=0 // pred_check
    %p281 = pneg %p277
  $region211: #{tpu_custom_call.1} parent=0 // pred_check_branch
    %283 = sbr.rel (%p281) target = $region213
  $region212: #{tpu_custom_call.1} parent=0 // pred_region
    %s284 = sshllo.u32 0, 8
    loop: start=0, step=1, limit=1
    $region214: #{tpu_custom_call.1} parent=212 // loop_pre_header
      _
    $region215: #{tpu_custom_call.1} parent=212 // loop_header
      %s286 = sphi 0, %s290
      %p287 = scmp.ge.s32.totalorder %s286, 1
      %s291 = sphi %s273, %s273
      %s292 = sphi %s274, %s274
    $region216: #{tpu_custom_call.1} parent=212 // loop_header_branch
      %289 = sbr.rel (%p287) target = $region220
    $region217: #{tpu_custom_call.1} parent=212 // loop_body
      %v293 = vld [vmem:[%s291] sm:%s284]
      %294 = vst [vmem:[%s292] sm:%s284] %v293
    $region218: #{tpu_custom_call.1} parent=212 // loop_footer
      %s290 = sadd.s32 1, %s286
    $region219: #{tpu_custom_call.1} parent=212 // loop_footer_branch
      %285 = sbr.rel target = $region215
    $region220: #{tpu_custom_call.1} parent=212 // loop_exit
      _
  $region213: #{tpu_custom_call.1} parent=0 // pred_fallthru
    _
  // Predicated region
  $region236: #{tpu_custom_call.1} parent=0 // pred_check
    _
  $region237: #{tpu_custom_call.1} parent=0 // pred_check_branch
    %316 = sbr.rel (0) target = $region239
  $region238: #{tpu_custom_call.1} parent=0 // pred_region
    %317 = vsyncadd %s275, 128
  $region239: #{tpu_custom_call.1} parent=0 // pred_fallthru
    _
  %s318 = scalar_lea.vmem %s0, 56
  %s319 = scalar_lea.vmem %s1, 56
  %s320 = scalar_lea.sflag [#allocation2], 7
  %p322 = scmp.lt.u32.totalorder 8, 8
  %p323 = pneg %p322
  // Predicated region
  $region240: #{tpu_custom_call.1} parent=0 // pred_check
    _
  $region241: #{tpu_custom_call.1} parent=0 // pred_check_branch
    %325 = sbr.rel (%p322) target = $region243
  $region242: #{tpu_custom_call.1} parent=0 // pred_region
    %s340 = sand.u32 8, 7
    %p341 = scmp.eq.s32.totalorder %s340, 0
    // Predicated region
    $region255: #{tpu_custom_call.1} parent=242 // pred_check
      %p342 = pneg %p341
    $region256: #{tpu_custom_call.1} parent=242 // pred_check_branch
      %344 = sbr.rel (%p342) target = $region258
    $region257: #{tpu_custom_call.1} parent=242 // pred_region
      loop: start=0, step=1, limit=1
      $region259: #{tpu_custom_call.1} parent=257 // loop_pre_header
        _
      $region260: #{tpu_custom_call.1} parent=257 // loop_header
        %s346 = sphi 0, %s350
        %p347 = scmp.ge.s32.totalorder %s346, 1
        %s351 = sphi %s318, %s318
        %s352 = sphi %s319, %s319
      $region261: #{tpu_custom_call.1} parent=257 // loop_header_branch
        %349 = sbr.rel (%p347) target = $region265
      $region262: #{tpu_custom_call.1} parent=257 // loop_body
        %v353 = vld [vmem:[%s351] sm:$0xff]
        %354 = vst [vmem:[%s352] sm:$0xff] %v353
      $region263: #{tpu_custom_call.1} parent=257 // loop_footer
        %s350 = sadd.s32 1, %s346
      $region264: #{tpu_custom_call.1} parent=257 // loop_footer_branch
        %345 = sbr.rel target = $region260
      $region265: #{tpu_custom_call.1} parent=257 // loop_exit
        _
    $region258: #{tpu_custom_call.1} parent=242 // pred_fallthru
      _
    %p355 = pneg %p341
    // Predicated region
    $region266: #{tpu_custom_call.1} parent=242 // pred_check
      _
    $region267: #{tpu_custom_call.1} parent=242 // pred_check_branch
      %357 = sbr.rel (%p341) target = $region269
    $region268: #{tpu_custom_call.1} parent=242 // pred_region
      %s358 = sand.u32 8, 7
    $region269: #{tpu_custom_call.1} parent=242 // pred_fallthru
      _
  $region243: #{tpu_custom_call.1} parent=0 // pred_fallthru
    _
  // Predicated region
  $region244: #{tpu_custom_call.1} parent=0 // pred_check
    %p326 = pneg %p322
  $region245: #{tpu_custom_call.1} parent=0 // pred_check_branch
    %328 = sbr.rel (%p326) target = $region247
  $region246: #{tpu_custom_call.1} parent=0 // pred_region
    %s329 = sshllo.u32 0, 8
    loop: start=0, step=1, limit=1
    $region248: #{tpu_custom_call.1} parent=246 // loop_pre_header
      _
    $region249: #{tpu_custom_call.1} parent=246 // loop_header
      %s331 = sphi 0, %s335
      %p332 = scmp.ge.s32.totalorder %s331, 1
      %s336 = sphi %s318, %s318
      %s337 = sphi %s319, %s319
    $region250: #{tpu_custom_call.1} parent=246 // loop_header_branch
      %334 = sbr.rel (%p332) target = $region254
    $region251: #{tpu_custom_call.1} parent=246 // loop_body
      %v338 = vld [vmem:[%s336] sm:%s329]
      %339 = vst [vmem:[%s337] sm:%s329] %v338
    $region252: #{tpu_custom_call.1} parent=246 // loop_footer
      %s335 = sadd.s32 1, %s331
    $region253: #{tpu_custom_call.1} parent=246 // loop_footer_branch
      %330 = sbr.rel target = $region249
    $region254: #{tpu_custom_call.1} parent=246 // loop_exit
      _
  $region247: #{tpu_custom_call.1} parent=0 // pred_fallthru
    _
  // Predicated region
  $region270: #{tpu_custom_call.1} parent=0 // pred_check
    _
  $region271: #{tpu_custom_call.1} parent=0 // pred_check_branch
    %361 = sbr.rel (0) target = $region273
  $region272: #{tpu_custom_call.1} parent=0 // pred_region
    %362 = vsyncadd %s320, 128
  $region273: #{tpu_custom_call.1} parent=0 // pred_fallthru
    _
  %s363 = smul.u32 8, 1
  %s364 = sshll.u32 %s363, 4
  %365 = dma.done [#allocation2], %s364
  %s366 = sshll.u32 %s363, 4
  %367 = dma.done %s50, %s366
  %s368 = sshll.u32 %s363, 4
  %369 = dma.done %s95, %s368
  %s370 = sshll.u32 %s363, 4
  %371 = dma.done %s140, %s370
  %s372 = sshll.u32 %s363, 4
  %373 = dma.done %s185, %s372
  %s374 = sshll.u32 %s363, 4
  %375 = dma.done %s230, %s374
  %s376 = sshll.u32 %s363, 4
  %377 = dma.done %s275, %s376
  %s378 = sshll.u32 %s363, 4
  %379 = dma.done %s320, %s378
  %380 = vsyncmov [#allocation2]
  %s381 = vpop.sfrf %380
  %p382 = scmp.eq.s32.totalorder %s381, 0
  %p383 = pneg %p382
  %385 = shalt.err (%p383)
  %s386 = scalar_lea.sflag [#allocation2], 1
  %387 = vsyncmov %s386
  %s388 = vpop.sfrf %387
  %p389 = scmp.eq.s32.totalorder %s388, 0
  %p390 = pneg %p389
  %392 = shalt.err (%p390)
  %s393 = scalar_lea.sflag [#allocation2], 2
  %394 = vsyncmov %s393
  %s395 = vpop.sfrf %394
  %p396 = scmp.eq.s32.totalorder %s395, 0
  %p397 = pneg %p396
  %399 = shalt.err (%p397)
  %s400 = scalar_lea.sflag [#allocation2], 3
  %401 = vsyncmov %s400
  %s402 = vpop.sfrf %401
  %p403 = scmp.eq.s32.totalorder %s402, 0
  %p404 = pneg %p403
  %406 = shalt.err (%p404)
  %s407 = scalar_lea.sflag [#allocation2], 4
  %408 = vsyncmov %s407
  %s409 = vpop.sfrf %408
  %p410 = scmp.eq.s32.totalorder %s409, 0
  %p411 = pneg %p410
  %413 = shalt.err (%p411)
  %s414 = scalar_lea.sflag [#allocation2], 5
  %415 = vsyncmov %s414
  %s416 = vpop.sfrf %415
  %p417 = scmp.eq.s32.totalorder %s416, 0
  %p418 = pneg %p417
  %420 = shalt.err (%p418)
  %s421 = scalar_lea.sflag [#allocation2], 6
  %422 = vsyncmov %s421
  %s423 = vpop.sfrf %422
  %p424 = scmp.eq.s32.totalorder %s423, 0
  %p425 = pneg %p424
  %427 = shalt.err (%p425)
  %s428 = scalar_lea.sflag [#allocation2], 7
  %429 = vsyncmov %s428
  %s430 = vpop.sfrf %429
  %p431 = scmp.eq.s32.totalorder %s430, 0
  %p432 = pneg %p431
  %434 = shalt.err (%p432)

</llo_original>
